<compile_context>
chip_gen: v5e
topology: v5e:2x2
jax: 0.10.0
libtpu: 0.0.40
codegen_flags: <defaults>
</compile_context>

<pallas_src>
import jax
import jax.numpy as jnp
from jax.experimental import pallas as pl
from jax.experimental.pallas import tpu as pltpu

# Candidate slab widths (large multiples of 128, widest first -> unmasked,
# lane-dense vector stores and fat DMAs).
_COL_CANDIDATES = (4096, 2048, 1024, 512, 256, 128)


def _device_tuning():
    """Per-TPU-generation (target_block_bytes, min_grid_steps).

    Footprint is ~4x the block (double-buffered input + output), so the block
    target is chosen to stay inside each generation's *scoped-VMEM default*
    without any flag changes.
    """
    kind = ""
    try:
        kind = jax.devices()[0].device_kind.lower()
    except Exception:
        pass
    if "v6" in kind:
        # v6e: 32 MiB scoped-VMEM default, 1 TC.  4 MiB blocks -> 16 MiB.
        return 4 * 1024 * 1024, 1
    if "7" in kind:
        # v7x: 64 MiB physical VMEM / 32 MiB scoped default, 2 TCs sharing HBM.
        # 4 MiB blocks, and require >= 4 grid steps so "parallel" actually
        # splits the stream across both TensorCores.
        return 4 * 1024 * 1024, 4
    # v5e (16 MiB scoped-VMEM default), older, or unknown parts: conservative.
    return 3 * 1024 * 1024, 1


def _pick_block_rows(rows, cols, itemsize, target_bytes, min_steps):
    """Block row count: multiple of 32 (safe sublane packing for f32/bf16/int8)
    sized from the per-generation byte target, optionally shrunk to guarantee
    at least `min_steps` grid steps (multi-TensorCore sharding on v7x)."""
    br = max(32, (target_bytes // (cols * itemsize)) // 32 * 32)
    if min_steps > 1 and rows >= min_steps * 32:
        br = min(br, max(32, (rows // min_steps) // 32 * 32))
    if rows <= br:
        br = rows  # single full-extent block (always a legal block shape)
    return br


def _learned_swish_kernel(beta_ref, x_ref, o_ref):
    # beta_ref: SMEM (1,) f32 ; x_ref / o_ref: VMEM tiles (block_rows, cols).
    beta = beta_ref[0]
    x = x_ref[...].astype(jnp.float32)
    # swish / SiLU with learned beta: x * sigmoid(beta * x).  Compute in f32
    # (bf16 inputs promote via the f32 beta), cast back on the store.
    o_ref[...] = (x * jax.nn.sigmoid(beta * x)).astype(o_ref.dtype)


def _swish_2d(x2d, beta_arr, block_rows):
    """Run the elementwise kernel over a (rows, cols) slab."""
    rows, cols = x2d.shape
    n_elems = rows * cols
    itemsize = jnp.dtype(x2d.dtype).itemsize
    grid = (pl.cdiv(rows, block_rows),)
    return pl.pallas_call(
        _learned_swish_kernel,
        out_shape=jax.ShapeDtypeStruct((rows, cols), x2d.dtype),
        grid=grid,
        in_specs=[
            pl.BlockSpec(memory_space=pltpu.SMEM),               # beta scalar
            pl.BlockSpec((block_rows, cols), lambda i: (i, 0)),  # x tile
        ],
        out_specs=pl.BlockSpec((block_rows, cols), lambda i: (i, 0)),
        compiler_params=pltpu.CompilerParams(
            dimension_semantics=("parallel",)  # shards steps over v7x's 2 TCs
        ),
        cost_estimate=pl.CostEstimate(
            flops=5 * n_elems,                       # mul, add, div, mul, cast
            transcendentals=n_elems,                 # one exp per element
            bytes_accessed=2 * n_elems * itemsize,   # read x + write out
        ),
    )(beta_arr, x2d)


def learned_swish(x, beta):
    """Elementwise x * sigmoid(beta * x). Works for any shape / float dtype."""
    orig_shape = x.shape
    dtype = x.dtype
    n = x.size
    if n == 0:
        return x

    beta_arr = jnp.asarray(beta, dtype=jnp.float32).reshape(1)
    x_flat = jnp.ravel(x)
    itemsize = jnp.dtype(dtype).itemsize
    target_bytes, min_steps = _device_tuning()

    # Fast path: widest lane-dense column count that divides the element count
    # (typical NCHW activation sizes hit this with zero copies).
    for c in _COL_CANDIDATES:
        if n % c == 0:
            rows = n // c
            block_rows = _pick_block_rows(rows, c, itemsize, target_bytes, min_steps)
            out2d = _swish_2d(x_flat.reshape(rows, c), beta_arr, block_rows)
            return out2d.reshape(orig_shape)

    # Rare fallback (size not a multiple of 128): run the kernel on the
    # 128-aligned prefix as-is (no full-array pad copy) and push the short
    # tail (< cols elements) through a tiny padded kernel call.
    cols = 1024 if n >= 1024 else 128
    n_main = (n // cols) * cols
    pieces = []
    if n_main > 0:
        rows = n_main // cols
        block_rows = _pick_block_rows(rows, cols, itemsize, target_bytes, min_steps)
        main_out = _swish_2d(
            x_flat[:n_main].reshape(rows, cols), beta_arr, block_rows
        )
        pieces.append(main_out.reshape(-1))
    tail_len = n - n_main
    if tail_len > 0:
        t_cols = 128
        t_pad = pl.cdiv(tail_len, t_cols) * t_cols          # <= cols, tiny
        tail = jnp.pad(x_flat[n_main:], (0, t_pad - tail_len))
        t_rows = t_pad // t_cols
        tail_out = _swish_2d(tail.reshape(t_rows, t_cols), beta_arr, t_rows)
        pieces.append(tail_out.reshape(-1)[:tail_len])
    out_flat = pieces[0] if len(pieces) == 1 else jnp.concatenate(pieces)
    return out_flat.reshape(orig_shape)


if __name__ == "__main__":
    # Deterministic parameter init, matching LearnedSwish(beta=1.0).__init__
    beta = jnp.float32(1.0)

    key = jax.random.PRNGKey(0)

    # Primary test: NCHW activation, size divisible by 128 -> zero-copy path.
    x = jax.random.normal(key, (2, 4, 16, 16), dtype=jnp.float32)
    y = jax.block_until_ready(learned_swish(x, beta))
    y_ref = x * jax.nn.sigmoid(beta * x)
    assert y.shape == x.shape and y.dtype == x.dtype
    assert jnp.max(jnp.abs(y - y_ref)) < 1e-6

    # Secondary test: odd size -> exercises the prefix + tail fallback path.
    x2 = jax.random.normal(jax.random.PRNGKey(1), (3, 5, 7, 11), dtype=jnp.float32)
    y2 = jax.block_until_ready(learned_swish(x2, beta))
    y2_ref = x2 * jax.nn.sigmoid(beta * x2)
    assert y2.shape == x2.shape and y2.dtype == x2.dtype
    assert jnp.max(jnp.abs(y2 - y2_ref)) < 1e-6

    print("KERNEL_OK")
</pallas_src>

<mosaic_0001>
module attributes {stable_mosaic.version = 11 : i64} {
  func.func @_learned_swish_kernel(%arg0: i32, %arg1: memref<1xf32, #tpu.memory_space<smem>>, %arg2: memref<1x2048xf32, #tpu.memory_space<vmem>>, %arg3: memref<1x2048xf32, #tpu.memory_space<vmem>>) attributes {dimension_semantics = [#tpu.dimension_semantics<parallel>], iteration_bounds = array<i64: 1>, scalar_prefetch = 0 : i64, scratch_operands = 0 : i64, tpu.core_type = #tpu.core_type<tc>, window_params = [{transform_indices = @transform_0, window_bounds = array<i64: 1>}, {transform_indices = @transform_1, window_bounds = array<i64: 1, 2048>}, {transform_indices = @transform_2, window_bounds = array<i64: 1, 2048>}]} {
    %c0 = arith.constant 0 : index
    %0 = memref.load %arg1[%c0] : memref<1xf32, #tpu.memory_space<smem>>
    %c0_0 = arith.constant 0 : index
    %c0_1 = arith.constant 0 : index
    %1 = vector.load %arg2[%c0_0, %c0_1] : memref<1x2048xf32, #tpu.memory_space<vmem>>, vector<1x2048xf32>
    %2 = vector.broadcast %0 : f32 to vector<1x2048xf32>
    %3 = arith.mulf %2, %1 : vector<1x2048xf32>
    %4 = arith.negf %3 : vector<1x2048xf32>
    %5 = math.exp %4 : vector<1x2048xf32>
    %cst = arith.constant 1.000000e+00 : f32
    %6 = vector.broadcast %cst : f32 to vector<1x2048xf32>
    %7 = arith.addf %6, %5 : vector<1x2048xf32>
    %8 = arith.divf %6, %7 : vector<1x2048xf32>
    %9 = arith.mulf %1, %8 : vector<1x2048xf32>
    %c0_2 = arith.constant 0 : index
    %c0_3 = arith.constant 0 : index
    %10 = vector.load %arg3[%c0_2, %c0_3] : memref<1x2048xf32, #tpu.memory_space<vmem>>, vector<1x2048xf32>
    tpu.vector_store %arg3[%c0_2, %c0_3], %9 {strides = array<i32>} : memref<1x2048xf32, #tpu.memory_space<vmem>>, vector<1x2048xf32>,
    return
  }
  func.func @transform_0(%arg0: i32) -> i32 {
    %c0_i32 = arith.constant 0 : i32
    %c0_i32_0 = arith.constant 0 : i32
    return %c0_i32 : i32
  }
  func.func @transform_1(%arg0: i32) -> (i32, i32) {
    %c0_i32 = arith.constant 0 : i32
    %c0_i32_0 = arith.constant 0 : i32
    return %arg0, %c0_i32 : i32, i32
  }
  func.func @transform_2(%arg0: i32) -> (i32, i32) {
    %c0_i32 = arith.constant 0 : i32
    %c0_i32_0 = arith.constant 0 : i32
    return %arg0, %c0_i32 : i32, i32
  }
}

</mosaic_0001>

<llo_original>
// kernel: tpu_custom_call.1
$region0: #{tpu_custom_call.1}
  #allocation0 [shape = 'u32[]', space=smem, size = 0x4, offset = 0x4, fixed_abs, tag = 'smem constant byte address 0x4 - core index']
  #allocation1 [shape = 'u32[72,128]{1,0:T(1,128)}', space=vmem, size = 0x9000, scoped, tag = 'internal scratch']
  #allocation2 [shape = 'f32[1]{0:T(128)S(6)}', space=smem, size = 0x200, scoped, tag = 'scoped memory for tpu_custom_call.1']
  %s0 = inlined_call_operand.<no memory space> [shape: f32[1], index: 0, kind: input, shape index: {}]
  %s1 = inlined_call_operand.hbm [shape: f32[1,2048], index: 1, kind: input, shape index: {}]
  %s2 = inlined_call_operand.hbm [shape: f32[1,2048], index: 2, kind: output, shape index: {}]
  %s3 = sld [smem:[#allocation0]]
  $region22: #{tpu_custom_call.1} parent=0
    _
  %s5 = ssub.s32 1, %s3
  %s6 = scalar_select 0, %s5, %s3
  %7 = sst [smem:[#allocation2]] %s0
  $region1: #{tpu_custom_call.1} parent=0
    #allocation3 [shape = 'u8[8192]{0}', space=vmem, size = 0x2000, scoped, tag = 'input window, operand 1, single buffered']
    #allocation4 [shape = 's32[1]{0}', space=sflag, size = 0x4, scoped, tag = 'scoped memory for tpu_custom_call.1']
    #allocation5 [shape = 's32[1]{0}', space=sflag, size = 0x4, scoped, tag = 'scoped memory for tpu_custom_call.1']
    #allocation6 [shape = 'u8[8192]{0}', space=vmem, size = 0x2000, scoped, tag = 'output window, operand 0, single buffered']
    %8 = vsyncpa [#allocation4], 0
    %9 = vsyncpa [#allocation5], 0
    // Predicated region
    $region2: #{tpu_custom_call.1} parent=1 // pred_check
      _
    $region3: #{tpu_custom_call.1} parent=1 // pred_check_branch
      %11 = sbr.rel (0) target = $region5
    $region4: #{tpu_custom_call.1} parent=1 // pred_region
      _
    $region5: #{tpu_custom_call.1} parent=1 // pred_fallthru
      _
    // Predicated region
    $region6: #{tpu_custom_call.1} parent=1 // pred_check
      _
    $region7: #{tpu_custom_call.1} parent=1 // pred_check_branch
      %13 = sbr.rel (0) target = $region9
    $region8: #{tpu_custom_call.1} parent=1 // pred_region
      %15 = vsyncadd [#allocation4], 0
      %s17 = sshll.u32 %s1, 4
      %s18 = int_to_ptr.hbm [resolvable:$true] %s17
      %s19 = sshll.u32 [#allocation3], 4
      %s20 = int_to_ptr.vmem [resolvable:$true] %s19
      %22 = dma.hbm_to_vmem [thread:$0]  %s18, 256, %s20, [#allocation4]
    $region9: #{tpu_custom_call.1} parent=1 // pred_fallthru
      _
    // Predicated region
    $region10: #{tpu_custom_call.1} parent=1 // pred_check
      _
    $region11: #{tpu_custom_call.1} parent=1 // pred_check_branch
      %24 = sbr.rel (0) target = $region13
    $region12: #{tpu_custom_call.1} parent=1 // pred_region
      %26 = dma.done [#allocation4], 256
    $region13: #{tpu_custom_call.1} parent=1 // pred_fallthru
      _
    %s27 = sld [smem:[#allocation2]]
    %v28 = vld [vmem:[#allocation3] sm:$0xff]
    %v29 = vld [vmem:[#allocation3 + $0x8] sm:$0xff]
    %v30 = vstv %s27
    %v31 = vmul.f32 %v30, %v28
    %v32 = vmul.f32 %v30, %v29
    %v33 = vxor.u32 %v31, 2147483648
    %v34 = vxor.u32 %v32, 2147483648
    %v35 = vmul.f32 %v33, 1.442695
    %v36 = vpow.pop %v35
    %v37 = vmul.f32 %v34, 1.442695
    %v38 = vpow.pop %v37
    %v39 = vadd.f32 %v36, 1.0
    %v40 = vadd.f32 %v38, 1.0
    %v41 = vrcp.pop %v39
    %v42 = vmul.f32 %v39, %v41
    %v43 = vsub.f32 1.0, %v42
    %v44 = vmul.f32 %v41, %v43
    %v45 = vadd.f32 %v41, %v44
    %vm46 = vweird.f32 %v39
    %vm47 = vweird.f32 %v41
    %vm48 = vmor %vm46, %vm47
    %v49 = vsel %vm48, %v41, %v45
    %v50 = vand.u32 2147483647, %v39
    %vm51 = vcmp.eq.f32.partialorder %v50, 8.507059e+37
    %v52 = vand.u32 %v39, 2147483648
    %v53 = vor.u32 1.1754944e-38, %v52
    %v54 = vsel %vm51, %v53, %v49
    %v55 = vmul.f32 1.0, %v54
    %v56 = vrcp.pop %v40
    %v57 = vmul.f32 %v40, %v56
    %v58 = vsub.f32 1.0, %v57
    %v59 = vmul.f32 %v56, %v58
    %v60 = vadd.f32 %v56, %v59
    %vm61 = vweird.f32 %v40
    %vm62 = vweird.f32 %v56
    %vm63 = vmor %vm61, %vm62
    %v64 = vsel %vm63, %v56, %v60
    %v65 = vand.u32 2147483647, %v40
    %vm66 = vcmp.eq.f32.partialorder %v65, 8.507059e+37
    %v67 = vand.u32 %v40, 2147483648
    %v68 = vor.u32 1.1754944e-38, %v67
    %v69 = vsel %vm66, %v68, %v64
    %v70 = vmul.f32 1.0, %v69
    %v71 = vmul.f32 %v28, %v55
    %v72 = vmul.f32 %v29, %v70
    %73 = vst [vmem:[#allocation6] sm:$0xff] %v71
    %74 = vst [vmem:[#allocation6 + $0x8] sm:$0xff] %v72
    // Predicated region
    $region14: #{tpu_custom_call.1} parent=1 // pred_check
      _
    $region15: #{tpu_custom_call.1} parent=1 // pred_check_branch
      %76 = sbr.rel (0) target = $region17
    $region16: #{tpu_custom_call.1} parent=1 // pred_region
      %78 = vsyncadd [#allocation5], 0
      %s80 = sshll.u32 [#allocation6], 4
      %s81 = int_to_ptr.vmem [resolvable:$true] %s80
      %s82 = sshll.u32 %s2, 4
      %s83 = int_to_ptr.hbm [resolvable:$true] %s82
      %85 = dma.vmem_to_hbm [thread:$0]  %s81, 256, %s83, [#allocation5]
    $region17: #{tpu_custom_call.1} parent=1 // pred_fallthru
      _
    // Predicated region
    $region18: #{tpu_custom_call.1} parent=1 // pred_check
      _
    $region19: #{tpu_custom_call.1} parent=1 // pred_check_branch
      %87 = sbr.rel (0) target = $region21
    $region20: #{tpu_custom_call.1} parent=1 // pred_region
      %89 = dma.done [#allocation5], 256
    $region21: #{tpu_custom_call.1} parent=1 // pred_fallthru
      _
    %90 = vsyncpa [#allocation4], 1
    %91 = vsyncpa [#allocation5], 1

</llo_original>
